<compile_context>
chip_gen: v7x
topology: tpu7x:2x2x1
jax: 0.10.0
libtpu: 0.0.40
codegen_flags: <defaults>
</compile_context>

<pallas_src>
import jax
import jax.numpy as jnp
from jax.experimental import pallas as pl
from jax.experimental.pallas import tpu as pltpu


def _round_up(x, m):
    return ((x + m - 1) // m) * m


def _bnn_kernel(x_ref, w1t_ref, b1_ref, w2t_ref, b2_ref, o_ref):
    # x_ref:  (Bt, 4)    w1t_ref: (4, 16)   b1_ref: (1, 16)
    # w2t_ref:(16, 3)    b2_ref:  (1, 3)    o_ref:  (Bt, 3)
    h = jnp.dot(x_ref[...], w1t_ref[...],
                preferred_element_type=jnp.float32)          # (Bt, 16)
    h = jnp.maximum(h + b1_ref[...], 0.0)                    # bias + ReLU
    out = jnp.dot(h, w2t_ref[...],
                  preferred_element_type=jnp.float32)        # (Bt, 3)
    out = out + b2_ref[...]
    o_ref[...] = out.astype(o_ref.dtype)


def bayesian_nn_forward(x, params, noise, *, b_tile=None, vmem_limit_bytes=None):
    """Fused BayesianNN forward.

    x:      (B, 4) float32
    params: dict of layer parameters (PyTorch __init__ shapes)
    noise:  dict of standard-normal eps arrays matching the parameter shapes
    b_tile: batch tile (rows per grid step).  Default: one tile for B<=2048,
            else 2048.  Multiple of 8 required (use multiples of 128).  For
            very large batches sweep 2048-32768 and pass vmem_limit_bytes if
            you exceed the ~32 MiB scoped default.
    """
    # --- sample weights/biases outside the kernel (batch-invariant) ---
    w1 = params["w1_mu"] + jnp.exp(params["w1_sigma"]) * noise["w1_eps"]   # (16, 4)
    b1 = params["b1_mu"] + jnp.exp(params["b1_sigma"]) * noise["b1_eps"]   # (16,)
    w2 = params["w2_mu"] + jnp.exp(params["w2_sigma"]) * noise["w2_eps"]   # (3, 16)
    b2 = params["b2_mu"] + jnp.exp(params["b2_sigma"]) * noise["b2_eps"]   # (3,)

    B, in_f = x.shape
    hid = w1.shape[0]
    out_f = w2.shape[0]

    if b_tile is None:
        if B <= 2048:
            b_tile = _round_up(max(B, 8), 128)   # single tile for small batches
        else:
            b_tile = 2048
    n_tiles = pl.cdiv(B, b_tile)

    # Tiny (<=64-element) transposes/reshapes of the sampled weights; negligible.
    w1t = w1.T                 # (4, 16)
    w2t = w2.T                 # (16, 3)
    b1r = b1[None, :]          # (1, 16)  broadcasts over batch rows
    b2r = b2[None, :]          # (1, 3)

    weight_bytes = 4 * (in_f * hid + hid + hid * out_f + out_f)
    cost = pl.CostEstimate(
        flops=2 * (in_f * hid + hid * out_f) * B,
        transcendentals=0,
        bytes_accessed=4 * (in_f + out_f) * B + weight_bytes,
    )

    cp_kwargs = dict(dimension_semantics=("parallel",))
    if vmem_limit_bytes is not None:
        cp_kwargs["vmem_limit_bytes"] = vmem_limit_bytes

    out = pl.pallas_call(
        _bnn_kernel,
        out_shape=jax.ShapeDtypeStruct((B, out_f), jnp.float32),
        grid=(n_tiles,),
        in_specs=[
            pl.BlockSpec((b_tile, in_f), lambda i: (i, 0)),   # x tile (batch on sublanes)
            pl.BlockSpec((in_f, hid), lambda i: (0, 0)),      # w1.T (resident)
            pl.BlockSpec((1, hid), lambda i: (0, 0)),         # b1
            pl.BlockSpec((hid, out_f), lambda i: (0, 0)),     # w2.T (resident)
            pl.BlockSpec((1, out_f), lambda i: (0, 0)),       # b2
        ],
        out_specs=pl.BlockSpec((b_tile, out_f), lambda i: (i, 0)),
        compiler_params=pltpu.CompilerParams(**cp_kwargs),
        cost_estimate=cost,
    )(x, w1t, b1r, w2t, b2r)

    return out   # (B, 3) -- no wrapper-side transpose / slice needed


def _reference_forward(x, params, noise):
    """Pure-JAX reference for correctness checking."""
    w1 = params["w1_mu"] + jnp.exp(params["w1_sigma"]) * noise["w1_eps"]
    b1 = params["b1_mu"] + jnp.exp(params["b1_sigma"]) * noise["b1_eps"]
    h = jnp.maximum(x @ w1.T + b1, 0.0)
    w2 = params["w2_mu"] + jnp.exp(params["w2_sigma"]) * noise["w2_eps"]
    b2 = params["b2_mu"] + jnp.exp(params["b2_sigma"]) * noise["b2_eps"]
    return h @ w2.T + b2


if __name__ == "__main__":
    key = jax.random.PRNGKey(0)
    k_x, k_w1, k_b1, k_w2, k_b2 = jax.random.split(key, 5)

    # Small iris-like batch; not a multiple of the tile to exercise the
    # masked (out-of-bounds) last-block path.
    B = 200
    x = jax.random.normal(k_x, (B, 4), dtype=jnp.float32)

    # Deterministic parameter init, matching BayesianLayer.__init__:
    #   weight_mu = zeros, weight_sigma = -5*ones, bias_mu = zeros, bias_sigma = -5*ones
    params = {
        "w1_mu":    jnp.zeros((16, 4), jnp.float32),
        "w1_sigma": jnp.full((16, 4), -5.0, jnp.float32),
        "b1_mu":    jnp.zeros((16,), jnp.float32),
        "b1_sigma": jnp.full((16,), -5.0, jnp.float32),
        "w2_mu":    jnp.zeros((3, 16), jnp.float32),
        "w2_sigma": jnp.full((3, 16), -5.0, jnp.float32),
        "b2_mu":    jnp.zeros((3,), jnp.float32),
        "b2_sigma": jnp.full((3,), -5.0, jnp.float32),
    }

    # torch.randn_like equivalents (deterministic).
    noise = {
        "w1_eps": jax.random.normal(k_w1, (16, 4), jnp.float32),
        "b1_eps": jax.random.normal(k_b1, (16,), jnp.float32),
        "w2_eps": jax.random.normal(k_w2, (3, 16), jnp.float32),
        "b2_eps": jax.random.normal(k_b2, (3,), jnp.float32),
    }

    out = bayesian_nn_forward(x, params, noise)
    out = jax.block_until_ready(out)

    ref = _reference_forward(x, params, noise)
    assert out.shape == (B, 3)
    assert jnp.allclose(out, ref, atol=1e-5, rtol=1e-5), "mismatch vs JAX reference"

    print("KERNEL_OK")
</pallas_src>

<mosaic_0001>
module attributes {stable_mosaic.version = 11 : i64} {
  func.func @_bnn_kernel(%arg0: i32, %arg1: memref<256x4xf32, #tpu.memory_space<vmem>>, %arg2: memref<4x16xf32, #tpu.memory_space<vmem>>, %arg3: memref<1x16xf32, #tpu.memory_space<vmem>>, %arg4: memref<16x3xf32, #tpu.memory_space<vmem>>, %arg5: memref<1x3xf32, #tpu.memory_space<vmem>>, %arg6: memref<256x3xf32, #tpu.memory_space<vmem>>) attributes {dimension_semantics = [#tpu.dimension_semantics<parallel>], iteration_bounds = array<i64: 1>, scalar_prefetch = 0 : i64, scratch_operands = 0 : i64, tpu.core_type = #tpu.core_type<tc>, window_params = [{transform_indices = @transform_0, window_bounds = array<i64: 256, 4>}, {pipeline_mode = #tpu.pipeline_mode<synchronous>, transform_indices = @transform_1, window_bounds = array<i64: 4, 16>}, {pipeline_mode = #tpu.pipeline_mode<synchronous>, transform_indices = @transform_2, window_bounds = array<i64: 1, 16>}, {pipeline_mode = #tpu.pipeline_mode<synchronous>, transform_indices = @transform_3, window_bounds = array<i64: 16, 3>}, {pipeline_mode = #tpu.pipeline_mode<synchronous>, transform_indices = @transform_4, window_bounds = array<i64: 1, 3>}, {transform_indices = @transform_5, window_bounds = array<i64: 256, 3>}]} {
    %c0 = arith.constant 0 : index
    %c0_0 = arith.constant 0 : index
    %0 = vector.load %arg1[%c0, %c0_0] : memref<256x4xf32, #tpu.memory_space<vmem>>, vector<256x4xf32>
    %c0_1 = arith.constant 0 : index
    %c0_2 = arith.constant 0 : index
    %1 = vector.load %arg2[%c0_1, %c0_2] : memref<4x16xf32, #tpu.memory_space<vmem>>, vector<4x16xf32>
    %cst = arith.constant dense<0.000000e+00> : vector<256x16xf32>
    %2 = tpu.matmul %0, %1, %cst {dimension_numbers = #tpu.dot_dimension_numbers<[1], [0], [0], [1], [0, 0, 1, 1], [], []>} : vector<256x4xf32>, vector<4x16xf32>, vector<256x16xf32> -> vector<256x16xf32>
    %c0_3 = arith.constant 0 : index
    %c0_4 = arith.constant 0 : index
    %3 = vector.load %arg3[%c0_3, %c0_4] : memref<1x16xf32, #tpu.memory_space<vmem>>, vector<1x16xf32>
    %4 = vector.broadcast %3 : vector<1x16xf32> to vector<256x16xf32>
    %5 = arith.addf %2, %4 : vector<256x16xf32>
    %cst_5 = arith.constant 0.000000e+00 : f32
    %6 = vector.broadcast %cst_5 : f32 to vector<256x16xf32>
    %7 = arith.maximumf %5, %6 : vector<256x16xf32>
    %c0_6 = arith.constant 0 : index
    %c0_7 = arith.constant 0 : index
    %8 = vector.load %arg4[%c0_6, %c0_7] : memref<16x3xf32, #tpu.memory_space<vmem>>, vector<16x3xf32>
    %cst_8 = arith.constant dense<0.000000e+00> : vector<256x3xf32>
    %9 = tpu.matmul %7, %8, %cst_8 {dimension_numbers = #tpu.dot_dimension_numbers<[1], [0], [0], [1], [0, 0, 1, 1], [], []>} : vector<256x16xf32>, vector<16x3xf32>, vector<256x3xf32> -> vector<256x3xf32>
    %c0_9 = arith.constant 0 : index
    %c0_10 = arith.constant 0 : index
    %10 = vector.load %arg5[%c0_9, %c0_10] : memref<1x3xf32, #tpu.memory_space<vmem>>, vector<1x3xf32>
    %11 = vector.broadcast %10 : vector<1x3xf32> to vector<256x3xf32>
    %12 = arith.addf %9, %11 : vector<256x3xf32>
    %c0_11 = arith.constant 0 : index
    %c0_12 = arith.constant 0 : index
    %13 = vector.load %arg6[%c0_11, %c0_12] : memref<256x3xf32, #tpu.memory_space<vmem>>, vector<256x3xf32>
    tpu.vector_store %arg6[%c0_11, %c0_12], %12 {strides = array<i32>} : memref<256x3xf32, #tpu.memory_space<vmem>>, vector<256x3xf32>,
    return
  }
  func.func @transform_0(%arg0: i32) -> (i32, i32) {
    %c0_i32 = arith.constant 0 : i32
    %c0_i32_0 = arith.constant 0 : i32
    return %arg0, %c0_i32 : i32, i32
  }
  func.func @transform_1(%arg0: i32) -> (i32, i32) {
    %c0_i32 = arith.constant 0 : i32
    %c0_i32_0 = arith.constant 0 : i32
    %c0_i32_1 = arith.constant 0 : i32
    return %c0_i32, %c0_i32_0 : i32, i32
  }
  func.func @transform_2(%arg0: i32) -> (i32, i32) {
    %c0_i32 = arith.constant 0 : i32
    %c0_i32_0 = arith.constant 0 : i32
    %c0_i32_1 = arith.constant 0 : i32
    return %c0_i32, %c0_i32_0 : i32, i32
  }
  func.func @transform_3(%arg0: i32) -> (i32, i32) {
    %c0_i32 = arith.constant 0 : i32
    %c0_i32_0 = arith.constant 0 : i32
    %c0_i32_1 = arith.constant 0 : i32
    return %c0_i32, %c0_i32_0 : i32, i32
  }
  func.func @transform_4(%arg0: i32) -> (i32, i32) {
    %c0_i32 = arith.constant 0 : i32
    %c0_i32_0 = arith.constant 0 : i32
    %c0_i32_1 = arith.constant 0 : i32
    return %c0_i32, %c0_i32_0 : i32, i32
  }
  func.func @transform_5(%arg0: i32) -> (i32, i32) {
    %c0_i32 = arith.constant 0 : i32
    %c0_i32_0 = arith.constant 0 : i32
    return %arg0, %c0_i32 : i32, i32
  }
}

</mosaic_0001>

<llo_original>
// kernel: tpu_custom_call.1
$region0: #{tpu_custom_call.1}
  #allocation0 [shape = 'u32[]', space=smem, size = 0x4, offset = 0x4, fixed_abs, tag = 'smem constant byte address 0x4 - core index']
  #allocation1 [shape = 'u32[144,128]{1,0:T(1,128)}', space=vmem, size = 0x12000, scoped, tag = 'internal scratch']
  %s0 = inlined_call_operand.vmem [shape: f32[200,4], index: 0, kind: input, shape index: {}]
  %s1 = inlined_call_operand.vmem [shape: f32[4,16], index: 1, kind: input, shape index: {}]
  %s2 = inlined_call_operand.vmem [shape: f32[1,16], index: 2, kind: input, shape index: {}]
  %s3 = inlined_call_operand.vmem [shape: f32[16,3], index: 3, kind: input, shape index: {}]
  %s4 = inlined_call_operand.vmem [shape: f32[1,3], index: 4, kind: input, shape index: {}]
  %s5 = inlined_call_operand.vmem [shape: f32[200,3], index: 5, kind: output, shape index: {}]
  %s6 = sld [smem:[#allocation0]]
  $region64: #{tpu_custom_call.1} parent=0
    _
  %s8 = ssub.s32 1, %s6
  %s9 = scalar_select 0, %s8, %s6
  $region1: #{tpu_custom_call.1} parent=0
    #allocation2 [shape = 'u8[131072]{0}', space=vmem, size = 0x20000, scoped, tag = 'output window, operand 0, single buffered']
    // Predicated region
    $region2: #{tpu_custom_call.1} parent=1 // pred_check
      _
    $region3: #{tpu_custom_call.1} parent=1 // pred_check_branch
      %11 = sbr.rel (0) target = $region5
    $region4: #{tpu_custom_call.1} parent=1 // pred_region
      _
    $region5: #{tpu_custom_call.1} parent=1 // pred_fallthru
      _
    // Predicated region
    $region6: #{tpu_custom_call.1} parent=1 // pred_check
      _
    $region7: #{tpu_custom_call.1} parent=1 // pred_check_branch
      %13 = sbr.rel (0) target = $region9
    $region8: #{tpu_custom_call.1} parent=1 // pred_region
      _
    $region9: #{tpu_custom_call.1} parent=1 // pred_fallthru
      _
    // Predicated region
    $region10: #{tpu_custom_call.1} parent=1 // pred_check
      _
    $region11: #{tpu_custom_call.1} parent=1 // pred_check_branch
      %15 = sbr.rel (0) target = $region13
    $region12: #{tpu_custom_call.1} parent=1 // pred_region
      _
    $region13: #{tpu_custom_call.1} parent=1 // pred_fallthru
      _
    // Predicated region
    $region14: #{tpu_custom_call.1} parent=1 // pred_check
      _
    $region15: #{tpu_custom_call.1} parent=1 // pred_check_branch
      %17 = sbr.rel (0) target = $region17
    $region16: #{tpu_custom_call.1} parent=1 // pred_region
      _
    $region17: #{tpu_custom_call.1} parent=1 // pred_fallthru
      _
    // Predicated region
    $region18: #{tpu_custom_call.1} parent=1 // pred_check
      _
    $region19: #{tpu_custom_call.1} parent=1 // pred_check_branch
      %19 = sbr.rel (0) target = $region21
    $region20: #{tpu_custom_call.1} parent=1 // pred_region
      _
    $region21: #{tpu_custom_call.1} parent=1 // pred_fallthru
      _
    %v20 = vld [vmem:[%s0] sm:$0xff]
    %v21 = vld [vmem:[%s0 + $0x8] sm:$0xff]
    %v22 = vld [vmem:[%s0 + $0x10] sm:$0xff]
    %v23 = vld [vmem:[%s0 + $0x18] sm:$0xff]
    %v24 = vld [vmem:[%s0 + $0x20] sm:$0xff]
    %v25 = vld [vmem:[%s0 + $0x28] sm:$0xff]
    %v26 = vld [vmem:[%s0 + $0x30] sm:$0xff]
    %v27 = vld [vmem:[%s0 + $0x38] sm:$0xff]
    %v28 = vld [vmem:[%s0 + $0x40] sm:$0xff]
    %v29 = vld [vmem:[%s0 + $0x48] sm:$0xff]
    %v30 = vld [vmem:[%s0 + $0x50] sm:$0xff]
    %v31 = vld [vmem:[%s0 + $0x58] sm:$0xff]
    %v32 = vld [vmem:[%s0 + $0x60] sm:$0xff]
    %v33 = vld [vmem:[%s0 + $0x68] sm:$0xff]
    %v34 = vld [vmem:[%s0 + $0x70] sm:$0xff]
    %v35 = vld [vmem:[%s0 + $0x78] sm:$0xff]
    %v36 = vld [vmem:[%s0 + $0x80] sm:$0xff]
    %v37 = vld [vmem:[%s0 + $0x88] sm:$0xff]
    %v38 = vld [vmem:[%s0 + $0x90] sm:$0xff]
    %v39 = vld [vmem:[%s0 + $0x98] sm:$0xff]
    %v40 = vld [vmem:[%s0 + $0xa0] sm:$0xff]
    %v41 = vld [vmem:[%s0 + $0xa8] sm:$0xff]
    %v42 = vld [vmem:[%s0 + $0xb0] sm:$0xff]
    %v43 = vld [vmem:[%s0 + $0xb8] sm:$0xff]
    %v44 = vld [vmem:[%s0 + $0xc0] sm:$0xff]
    %v45 = vld [vmem:[%s0 + $0xc8] sm:$0xff]
    %v46 = vld [vmem:[%s0 + $0xd0] sm:$0xff]
    %v47 = vld [vmem:[%s0 + $0xd8] sm:$0xff]
    %v48 = vld [vmem:[%s0 + $0xe0] sm:$0xff]
    %v49 = vld [vmem:[%s0 + $0xe8] sm:$0xff]
    %v50 = vld [vmem:[%s0 + $0xf0] sm:$0xff]
    %v51 = vld [vmem:[%s0 + $0xf8] sm:$0xff]
    %v52 = vld [vmem:[%s1] sm:$0xf]
    %v53 = vld [vmem:[%s2] sm:$0x1]
    %v55 = vlaneseq
    %v56 = vshrl.u32 %v55, 7
    %v57 = vsub.s32 0, %v56
    %v58 = vrot.slane %v53, %v57
    %vm60 = vcmask 31744
    %v62 = vsel %vm60, %v20, 0
    %v65 = vsel %vm60, %v21, 0
    %v68 = vsel %vm60, %v22, 0
    %v71 = vsel %vm60, %v23, 0
    %v74 = vsel %vm60, %v24, 0
    %v77 = vsel %vm60, %v25, 0
    %v80 = vsel %vm60, %v26, 0
    %v83 = vsel %vm60, %v27, 0
    %v86 = vsel %vm60, %v28, 0
    %v89 = vsel %vm60, %v29, 0
    %v92 = vsel %vm60, %v30, 0
    %v95 = vsel %vm60, %v31, 0
    %v98 = vsel %vm60, %v32, 0
    %v101 = vsel %vm60, %v33, 0
    %v104 = vsel %vm60, %v34, 0
    %v107 = vsel %vm60, %v35, 0
    %v110 = vsel %vm60, %v36, 0
    %v113 = vsel %vm60, %v37, 0
    %v116 = vsel %vm60, %v38, 0
    %v119 = vsel %vm60, %v39, 0
    %v122 = vsel %vm60, %v40, 0
    %v125 = vsel %vm60, %v41, 0
    %v128 = vsel %vm60, %v42, 0
    %v131 = vsel %vm60, %v43, 0
    %v134 = vsel %vm60, %v44, 0
    %v137 = vsel %vm60, %v45, 0
    %v140 = vsel %vm60, %v46, 0
    %v143 = vsel %vm60, %v47, 0
    %v146 = vsel %vm60, %v48, 0
    %v149 = vsel %vm60, %v49, 0
    %v152 = vsel %vm60, %v50, 0
    %v155 = vsel %vm60, %v51, 0
    %vm157 = vcmask 1043456
    %v159 = vsel %vm157, %v52, 0
    %161 = vmatprep.subr.mxu0 0.0
    %162 = vmatpush1.msra.mxu0 %v159
    %163 = vmatprep.subr.mxu0 0.0
    %164 = vmatpush1.msra.mxu0 0.0
    %165 = vmatprep.subr.mxu0 0.0
    %166 = vmatpush1.msra.mxu0 0.0
    %167 = vmatprep.subr.mxu0 0.0
    %168 = vmatpush1.msra.mxu0 0.0
    %169 = vmatprep.subr.mxu0 0.0
    %170 = vmatpush1.msra.mxu0 0.0
    %171 = vmatprep.subr.mxu0 0.0
    %172 = vmatpush1.msra.mxu0 0.0
    %173 = vmatprep.subr.mxu0 0.0
    %174 = vmatpush1.msra.mxu0 0.0
    %175 = vmatprep.subr.mxu0 0.0
    %176 = vmatpush1.msra.mxu0 0.0
    %177 = vmatprep.subr.mxu0 0.0
    %178 = vmatpush1.msra.mxu0 0.0
    %179 = vmatprep.subr.mxu0 0.0
    %180 = vmatpush1.msra.mxu0 0.0
    %181 = vmatprep.subr.mxu0 0.0
    %182 = vmatpush1.msra.mxu0 0.0
    %183 = vmatprep.subr.mxu0 0.0
    %184 = vmatpush1.msra.mxu0 0.0
    %185 = vmatprep.subr.mxu0 0.0
    %186 = vmatpush1.msra.mxu0 0.0
    %187 = vmatprep.subr.mxu0 0.0
    %188 = vmatpush1.msra.mxu0 0.0
    %189 = vmatprep.subr.mxu0 0.0
    %190 = vmatpush1.msra.mxu0 0.0
    %191 = vmatprep.subr.mxu0 0.0
    %192 = vmatpush1.msra.mxu0 0.0
    %193 = vmatprep.subr.mxu0 0.0
    %194 = vmatpush1.msra.mxu0 0.0
    %195 = vmatprep.subr.mxu0 0.0
    %196 = vmatpush1.msra.mxu0 0.0
    %197 = vmatprep.subr.mxu0 0.0
    %198 = vmatpush1.msra.mxu0 0.0
    %199 = vmatprep.subr.mxu0 0.0
    %200 = vmatpush1.msra.mxu0 0.0
    %201 = vmatprep.subr.mxu0 0.0
    %202 = vmatpush1.msra.mxu0 0.0
    %203 = vmatprep.subr.mxu0 0.0
    %204 = vmatpush1.msra.mxu0 0.0
    %205 = vmatprep.subr.mxu0 0.0
    %206 = vmatpush1.msra.mxu0 0.0
    %207 = vmatprep.subr.mxu0 0.0
    %208 = vmatpush1.msra.mxu0 0.0
    %209 = vmatprep.subr.mxu0 0.0
    %210 = vmatpush1.msra.mxu0 0.0
    %211 = vmatprep.subr.mxu0 0.0
    %212 = vmatpush1.msra.mxu0 0.0
    %213 = vmatprep.subr.mxu0 0.0
    %214 = vmatpush1.msra.mxu0 0.0
    %215 = vmatprep.subr.mxu0 0.0
    %216 = vmatpush1.msra.mxu0 0.0
    %217 = vmatprep.subr.mxu0 0.0
    %218 = vmatpush1.msra.mxu0 0.0
    %219 = vmatprep.subr.mxu0 0.0
    %220 = vmatpush1.msra.mxu0 0.0
    %221 = vmatprep.subr.mxu0 0.0
    %222 = vmatpush1.msra.mxu0 0.0
    %223 = vmatprep.subr.mxu0 0.0
    %224 = vmatpush1.msra.mxu0 0.0
    %225 = vmatprep.mubr.f32.mxu0 0.0
    %226 = vmatmul.mubr.f32.gmra.mrb[0].mxu0 %v62
    %v227 = vpop.f32.mrb[0].mxu0
    %v228 = vadd.f32 %v58, %v227
    %v229 = vpop.f32.mrb[0].mxu0
    %230 = vmatprep.mubr.f32.mxu0 0.0
    %231 = vmatmul.mubr.f32.gmra.mrb[0].mxu0 %v65
    %v232 = vpop.f32.mrb[0].mxu0
    %v233 = vadd.f32 %v58, %v232
    %v234 = vpop.f32.mrb[0].mxu0
    %235 = vmatprep.mubr.f32.mxu0 0.0
    %236 = vmatmul.mubr.f32.gmra.mrb[0].mxu0 %v68
    %v237 = vpop.f32.mrb[0].mxu0
    %v238 = vadd.f32 %v58, %v237
    %v239 = vpop.f32.mrb[0].mxu0
    %240 = vmatprep.mubr.f32.mxu0 0.0
    %241 = vmatmul.mubr.f32.gmra.mrb[0].mxu0 %v71
    %v242 = vpop.f32.mrb[0].mxu0
    %v243 = vadd.f32 %v58, %v242
    %v244 = vpop.f32.mrb[0].mxu0
    %245 = vmatprep.mubr.f32.mxu0 0.0
    %246 = vmatmul.mubr.f32.gmra.mrb[0].mxu0 %v74
    %v247 = vpop.f32.mrb[0].mxu0
    %v248 = vadd.f32 %v58, %v247
    %v249 = vpop.f32.mrb[0].mxu0
    %250 = vmatprep.mubr.f32.mxu0 0.0
    %251 = vmatmul.mubr.f32.gmra.mrb[0].mxu0 %v77
    %v252 = vpop.f32.mrb[0].mxu0
    %v253 = vadd.f32 %v58, %v252
    %v254 = vpop.f32.mrb[0].mxu0
    %255 = vmatprep.mubr.f32.mxu0 0.0
    %256 = vmatmul.mubr.f32.gmra.mrb[0].mxu0 %v80
    %v257 = vpop.f32.mrb[0].mxu0
    %v258 = vadd.f32 %v58, %v257
    %v259 = vpop.f32.mrb[0].mxu0
    %260 = vmatprep.mubr.f32.mxu0 0.0
    %261 = vmatmul.mubr.f32.gmra.mrb[0].mxu0 %v83
    %v262 = vpop.f32.mrb[0].mxu0
    %v263 = vadd.f32 %v58, %v262
    %v264 = vpop.f32.mrb[0].mxu0
    %265 = vmatprep.mubr.f32.mxu0 0.0
    %266 = vmatmul.mubr.f32.gmra.mrb[0].mxu0 %v86
    %v267 = vpop.f32.mrb[0].mxu0
    %v268 = vadd.f32 %v58, %v267
    %v269 = vpop.f32.mrb[0].mxu0
    %270 = vmatprep.mubr.f32.mxu0 0.0
    %271 = vmatmul.mubr.f32.gmra.mrb[0].mxu0 %v89
    %v272 = vpop.f32.mrb[0].mxu0
    %v273 = vadd.f32 %v58, %v272
    %v274 = vpop.f32.mrb[0].mxu0
    %275 = vmatprep.mubr.f32.mxu0 0.0
    %276 = vmatmul.mubr.f32.gmra.mrb[0].mxu0 %v92
    %v277 = vpop.f32.mrb[0].mxu0
    %v278 = vadd.f32 %v58, %v277
    %v279 = vpop.f32.mrb[0].mxu0
    %280 = vmatprep.mubr.f32.mxu0 0.0
    %281 = vmatmul.mubr.f32.gmra.mrb[0].mxu0 %v95
    %v282 = vpop.f32.mrb[0].mxu0
    %v283 = vadd.f32 %v58, %v282
    %v284 = vpop.f32.mrb[0].mxu0
    %285 = vmatprep.mubr.f32.mxu0 0.0
    %286 = vmatmul.mubr.f32.gmra.mrb[0].mxu0 %v98
    %v287 = vpop.f32.mrb[0].mxu0
    %v288 = vadd.f32 %v58, %v287
    %v289 = vpop.f32.mrb[0].mxu0
    %290 = vmatprep.mubr.f32.mxu0 0.0
    %291 = vmatmul.mubr.f32.gmra.mrb[0].mxu0 %v101
    %v292 = vpop.f32.mrb[0].mxu0
    %v293 = vadd.f32 %v58, %v292
    %v294 = vpop.f32.mrb[0].mxu0
    %295 = vmatprep.mubr.f32.mxu0 0.0
    %296 = vmatmul.mubr.f32.gmra.mrb[0].mxu0 %v104
    %v297 = vpop.f32.mrb[0].mxu0
    %v298 = vadd.f32 %v58, %v297
    %v299 = vpop.f32.mrb[0].mxu0
    %300 = vmatprep.mubr.f32.mxu0 0.0
    %301 = vmatmul.mubr.f32.gmra.mrb[0].mxu0 %v107
    %v302 = vpop.f32.mrb[0].mxu0
    %v303 = vadd.f32 %v58, %v302
    %v304 = vpop.f32.mrb[0].mxu0
    %305 = vmatprep.mubr.f32.mxu0 0.0
    %306 = vmatmul.mubr.f32.gmra.mrb[0].mxu0 %v110
    %v307 = vpop.f32.mrb[0].mxu0
    %v308 = vadd.f32 %v58, %v307
    %v309 = vpop.f32.mrb[0].mxu0
    %310 = vmatprep.mubr.f32.mxu0 0.0
    %311 = vmatmul.mubr.f32.gmra.mrb[0].mxu0 %v113
    %v312 = vpop.f32.mrb[0].mxu0
    %v313 = vadd.f32 %v58, %v312
    %v314 = vpop.f32.mrb[0].mxu0
    %315 = vmatprep.mubr.f32.mxu0 0.0
    %316 = vmatmul.mubr.f32.gmra.mrb[0].mxu0 %v116
    %v317 = vpop.f32.mrb[0].mxu0
    %v318 = vadd.f32 %v58, %v317
    %v319 = vpop.f32.mrb[0].mxu0
    %320 = vmatprep.mubr.f32.mxu0 0.0
    %321 = vmatmul.mubr.f32.gmra.mrb[0].mxu0 %v119
    %v322 = vpop.f32.mrb[0].mxu0
    %v323 = vadd.f32 %v58, %v322
    %v324 = vpop.f32.mrb[0].mxu0
    %325 = vmatprep.mubr.f32.mxu0 0.0
    %326 = vmatmul.mubr.f32.gmra.mrb[0].mxu0 %v122
    %v327 = vpop.f32.mrb[0].mxu0
    %v328 = vadd.f32 %v58, %v327
    %v329 = vpop.f32.mrb[0].mxu0
    %330 = vmatprep.mubr.f32.mxu0 0.0
    %331 = vmatmul.mubr.f32.gmra.mrb[0].mxu0 %v125
    %v332 = vpop.f32.mrb[0].mxu0
    %v333 = vadd.f32 %v58, %v332
    %v334 = vpop.f32.mrb[0].mxu0
    %335 = vmatprep.mubr.f32.mxu0 0.0
    %336 = vmatmul.mubr.f32.gmra.mrb[0].mxu0 %v128
    %v337 = vpop.f32.mrb[0].mxu0
    %v338 = vadd.f32 %v58, %v337
    %v339 = vpop.f32.mrb[0].mxu0
    %340 = vmatprep.mubr.f32.mxu0 0.0
    %341 = vmatmul.mubr.f32.gmra.mrb[0].mxu0 %v131
    %v342 = vpop.f32.mrb[0].mxu0
    %v343 = vadd.f32 %v58, %v342
    %v344 = vpop.f32.mrb[0].mxu0
    %345 = vmatprep.mubr.f32.mxu0 0.0
    %346 = vmatmul.mubr.f32.gmra.mrb[0].mxu0 %v134
    %v347 = vpop.f32.mrb[0].mxu0
    %v348 = vadd.f32 %v58, %v347
    %v349 = vpop.f32.mrb[0].mxu0
    %350 = vmatprep.mubr.f32.mxu0 0.0
    %351 = vmatmul.mubr.f32.gmra.mrb[0].mxu0 %v137
    %v352 = vpop.f32.mrb[0].mxu0
    %v353 = vadd.f32 %v58, %v352
    %v354 = vpop.f32.mrb[0].mxu0
    %355 = vmatprep.mubr.f32.mxu0 0.0
    %356 = vmatmul.mubr.f32.gmra.mrb[0].mxu0 %v140
    %v357 = vpop.f32.mrb[0].mxu0
    %v358 = vadd.f32 %v58, %v357
    %v359 = vpop.f32.mrb[0].mxu0
    %360 = vmatprep.mubr.f32.mxu0 0.0
    %361 = vmatmul.mubr.f32.gmra.mrb[0].mxu0 %v143
    %v362 = vpop.f32.mrb[0].mxu0
    %v363 = vadd.f32 %v58, %v362
    %v364 = vpop.f32.mrb[0].mxu0
    %365 = vmatprep.mubr.f32.mxu0 0.0
    %366 = vmatmul.mubr.f32.gmra.mrb[0].mxu0 %v146
    %v367 = vpop.f32.mrb[0].mxu0
    %v368 = vadd.f32 %v58, %v367
    %v369 = vpop.f32.mrb[0].mxu0
    %370 = vmatprep.mubr.f32.mxu0 0.0
    %371 = vmatmul.mubr.f32.gmra.mrb[0].mxu0 %v149
    %v372 = vpop.f32.mrb[0].mxu0
    %v373 = vadd.f32 %v58, %v372
    %v374 = vpop.f32.mrb[0].mxu0
    %375 = vmatprep.mubr.f32.mxu0 0.0
    %376 = vmatmul.mubr.f32.gmra.mrb[0].mxu0 %v152
    %v377 = vpop.f32.mrb[0].mxu0
    %v378 = vadd.f32 %v58, %v377
    %v379 = vpop.f32.mrb[0].mxu0
    %380 = vmatprep.mubr.f32.mxu0 0.0
    %381 = vmatmul.mubr.f32.gmra.mrb[0].mxu0 %v155
    %v382 = vpop.f32.mrb[0].mxu0
    %v383 = vadd.f32 %v58, %v382
    %v384 = vpop.f32.mrb[0].mxu0
    %385 = vdwg.mxu0
    %v386 = vmax.f32 %v228, 0.0
    %v387 = vmax.f32 %v233, 0.0
    %v388 = vmax.f32 %v238, 0.0
    %v389 = vmax.f32 %v243, 0.0
    %v390 = vmax.f32 %v248, 0.0
    %v391 = vmax.f32 %v253, 0.0
    %v392 = vmax.f32 %v258, 0.0
    %v393 = vmax.f32 %v263, 0.0
    %v394 = vmax.f32 %v268, 0.0
    %v395 = vmax.f32 %v273, 0.0
    %v396 = vmax.f32 %v278, 0.0
    %v397 = vmax.f32 %v283, 0.0
    %v398 = vmax.f32 %v288, 0.0
    %v399 = vmax.f32 %v293, 0.0
    %v400 = vmax.f32 %v298, 0.0
    %v401 = vmax.f32 %v303, 0.0
    %v402 = vmax.f32 %v308, 0.0
    %v403 = vmax.f32 %v313, 0.0
    %v404 = vmax.f32 %v318, 0.0
    %v405 = vmax.f32 %v323, 0.0
    %v406 = vmax.f32 %v328, 0.0
    %v407 = vmax.f32 %v333, 0.0
    %v408 = vmax.f32 %v338, 0.0
    %v409 = vmax.f32 %v343, 0.0
    %v410 = vmax.f32 %v348, 0.0
    %v411 = vmax.f32 %v353, 0.0
    %v412 = vmax.f32 %v358, 0.0
    %v413 = vmax.f32 %v363, 0.0
    %v414 = vmax.f32 %v368, 0.0
    %v415 = vmax.f32 %v373, 0.0
    %v416 = vmax.f32 %v378, 0.0
    %v417 = vmax.f32 %v383, 0.0
    %v418 = vld [vmem:[%s3] sm:$0xff]
    %v419 = vld [vmem:[%s3 + $0x8] sm:$0xff]
    %v420 = vld [vmem:[%s4] sm:$0x1]
    %v422 = vlaneseq
    %v423 = vshrl.u32 %v422, 7
    %v424 = vsub.s32 0, %v423
    %v425 = vrot.slane %v420, %v424
    %vm427 = vcmask 130048
    %v429 = vsel %vm427, %v386, 0
    %v432 = vsel %vm427, %v387, 0
    %v435 = vsel %vm427, %v388, 0
    %v438 = vsel %vm427, %v389, 0
    %v441 = vsel %vm427, %v390, 0
    %v444 = vsel %vm427, %v391, 0
    %v447 = vsel %vm427, %v392, 0
    %v450 = vsel %vm427, %v393, 0
    %v453 = vsel %vm427, %v394, 0
    %v456 = vsel %vm427, %v395, 0
    %v459 = vsel %vm427, %v396, 0
    %v462 = vsel %vm427, %v397, 0
    %v465 = vsel %vm427, %v398, 0
    %v468 = vsel %vm427, %v399, 0
    %v471 = vsel %vm427, %v400, 0
    %v474 = vsel %vm427, %v401, 0
    %v477 = vsel %vm427, %v402, 0
    %v480 = vsel %vm427, %v403, 0
    %v483 = vsel %vm427, %v404, 0
    %v486 = vsel %vm427, %v405, 0
    %v489 = vsel %vm427, %v406, 0
    %v492 = vsel %vm427, %v407, 0
    %v495 = vsel %vm427, %v408, 0
    %v498 = vsel %vm427, %v409, 0
    %v501 = vsel %vm427, %v410, 0
    %v504 = vsel %vm427, %v411, 0
    %v507 = vsel %vm427, %v412, 0
    %v510 = vsel %vm427, %v413, 0
    %v513 = vsel %vm427, %v414, 0
    %v516 = vsel %vm427, %v415, 0
    %v519 = vsel %vm427, %v416, 0
    %v522 = vsel %vm427, %v417, 0
    %524 = vmatprep.subr.mxu0 0.0
    %525 = vmatpush1.msra.mxu0 %v418
    %526 = vmatprep.subr.mxu0 0.0
    %527 = vmatpush1.msra.mxu0 %v419
    %528 = vmatprep.subr.mxu0 0.0
    %529 = vmatpush1.msra.mxu0 0.0
    %530 = vmatprep.subr.mxu0 0.0
    %531 = vmatpush1.msra.mxu0 0.0
    %532 = vmatprep.subr.mxu0 0.0
    %533 = vmatpush1.msra.mxu0 0.0
    %534 = vmatprep.subr.mxu0 0.0
    %535 = vmatpush1.msra.mxu0 0.0
    %536 = vmatprep.subr.mxu0 0.0
    %537 = vmatpush1.msra.mxu0 0.0
    %538 = vmatprep.subr.mxu0 0.0
    %539 = vmatpush1.msra.mxu0 0.0
    %540 = vmatprep.subr.mxu0 0.0
    %541 = vmatpush1.msra.mxu0 0.0
    %542 = vmatprep.subr.mxu0 0.0
    %543 = vmatpush1.msra.mxu0 0.0
    %544 = vmatprep.subr.mxu0 0.0
    %545 = vmatpush1.msra.mxu0 0.0
    %546 = vmatprep.subr.mxu0 0.0
    %547 = vmatpush1.msra.mxu0 0.0
    %548 = vmatprep.subr.mxu0 0.0
    %549 = vmatpush1.msra.mxu0 0.0
    %550 = vmatprep.subr.mxu0 0.0
    %551 = vmatpush1.msra.mxu0 0.0
    %552 = vmatprep.subr.mxu0 0.0
    %553 = vmatpush1.msra.mxu0 0.0
    %554 = vmatprep.subr.mxu0 0.0
    %555 = vmatpush1.msra.mxu0 0.0
    %556 = vmatprep.subr.mxu0 0.0
    %557 = vmatpush1.msra.mxu0 0.0
    %558 = vmatprep.subr.mxu0 0.0
    %559 = vmatpush1.msra.mxu0 0.0
    %560 = vmatprep.subr.mxu0 0.0
    %561 = vmatpush1.msra.mxu0 0.0
    %562 = vmatprep.subr.mxu0 0.0
    %563 = vmatpush1.msra.mxu0 0.0
    %564 = vmatprep.subr.mxu0 0.0
    %565 = vmatpush1.msra.mxu0 0.0
    %566 = vmatprep.subr.mxu0 0.0
    %567 = vmatpush1.msra.mxu0 0.0
    %568 = vmatprep.subr.mxu0 0.0
    %569 = vmatpush1.msra.mxu0 0.0
    %570 = vmatprep.subr.mxu0 0.0
    %571 = vmatpush1.msra.mxu0 0.0
    %572 = vmatprep.subr.mxu0 0.0
    %573 = vmatpush1.msra.mxu0 0.0
    %574 = vmatprep.subr.mxu0 0.0
    %575 = vmatpush1.msra.mxu0 0.0
    %576 = vmatprep.subr.mxu0 0.0
    %577 = vmatpush1.msra.mxu0 0.0
    %578 = vmatprep.subr.mxu0 0.0
    %579 = vmatpush1.msra.mxu0 0.0
    %580 = vmatprep.subr.mxu0 0.0
    %581 = vmatpush1.msra.mxu0 0.0
    %582 = vmatprep.subr.mxu0 0.0
    %583 = vmatpush1.msra.mxu0 0.0
    %584 = vmatprep.subr.mxu0 0.0
    %585 = vmatpush1.msra.mxu0 0.0
    %586 = vmatprep.subr.mxu0 0.0
    %587 = vmatpush1.msra.mxu0 0.0
    %588 = vmatprep.mubr.f32.mxu0 0.0
    %589 = vmatmul.mubr.f32.gmra.mrb[0].mxu0 %v429
    %v590 = vpop.f32.mrb[0].mxu0
    %v591 = vadd.f32 %v425, %v590
    %v592 = vpop.f32.mrb[0].mxu0
    %593 = vmatprep.mubr.f32.mxu0 0.0
    %594 = vmatmul.mubr.f32.gmra.mrb[0].mxu0 %v432
    %v595 = vpop.f32.mrb[0].mxu0
    %v596 = vadd.f32 %v425, %v595
    %v597 = vpop.f32.mrb[0].mxu0
    %598 = vmatprep.mubr.f32.mxu0 0.0
    %599 = vmatmul.mubr.f32.gmra.mrb[0].mxu0 %v435
    %v600 = vpop.f32.mrb[0].mxu0
    %v601 = vadd.f32 %v425, %v600
    %v602 = vpop.f32.mrb[0].mxu0
    %603 = vmatprep.mubr.f32.mxu0 0.0
    %604 = vmatmul.mubr.f32.gmra.mrb[0].mxu0 %v438
    %v605 = vpop.f32.mrb[0].mxu0
    %v606 = vadd.f32 %v425, %v605
    %v607 = vpop.f32.mrb[0].mxu0
    %608 = vmatprep.mubr.f32.mxu0 0.0
    %609 = vmatmul.mubr.f32.gmra.mrb[0].mxu0 %v441
    %v610 = vpop.f32.mrb[0].mxu0
    %v611 = vadd.f32 %v425, %v610
    %v612 = vpop.f32.mrb[0].mxu0
    %613 = vmatprep.mubr.f32.mxu0 0.0
    %614 = vmatmul.mubr.f32.gmra.mrb[0].mxu0 %v444
    %v615 = vpop.f32.mrb[0].mxu0
    %v616 = vadd.f32 %v425, %v615
    %v617 = vpop.f32.mrb[0].mxu0
    %618 = vmatprep.mubr.f32.mxu0 0.0
    %619 = vmatmul.mubr.f32.gmra.mrb[0].mxu0 %v447
    %v620 = vpop.f32.mrb[0].mxu0
    %v621 = vadd.f32 %v425, %v620
    %v622 = vpop.f32.mrb[0].mxu0
    %623 = vmatprep.mubr.f32.mxu0 0.0
    %624 = vmatmul.mubr.f32.gmra.mrb[0].mxu0 %v450
    %v625 = vpop.f32.mrb[0].mxu0
    %v626 = vadd.f32 %v425, %v625
    %v627 = vpop.f32.mrb[0].mxu0
    %628 = vmatprep.mubr.f32.mxu0 0.0
    %629 = vmatmul.mubr.f32.gmra.mrb[0].mxu0 %v453
    %v630 = vpop.f32.mrb[0].mxu0
    %v631 = vadd.f32 %v425, %v630
    %v632 = vpop.f32.mrb[0].mxu0
    %633 = vmatprep.mubr.f32.mxu0 0.0
    %634 = vmatmul.mubr.f32.gmra.mrb[0].mxu0 %v456
    %v635 = vpop.f32.mrb[0].mxu0
    %v636 = vadd.f32 %v425, %v635
    %v637 = vpop.f32.mrb[0].mxu0
    %638 = vmatprep.mubr.f32.mxu0 0.0
    %639 = vmatmul.mubr.f32.gmra.mrb[0].mxu0 %v459
    %v640 = vpop.f32.mrb[0].mxu0
    %v641 = vadd.f32 %v425, %v640
    %v642 = vpop.f32.mrb[0].mxu0
    %643 = vmatprep.mubr.f32.mxu0 0.0
    %644 = vmatmul.mubr.f32.gmra.mrb[0].mxu0 %v462
    %v645 = vpop.f32.mrb[0].mxu0
    %v646 = vadd.f32 %v425, %v645
    %v647 = vpop.f32.mrb[0].mxu0
    %648 = vmatprep.mubr.f32.mxu0 0.0
    %649 = vmatmul.mubr.f32.gmra.mrb[0].mxu0 %v465
    %v650 = vpop.f32.mrb[0].mxu0
    %v651 = vadd.f32 %v425, %v650
    %v652 = vpop.f32.mrb[0].mxu0
    %653 = vmatprep.mubr.f32.mxu0 0.0
    %654 = vmatmul.mubr.f32.gmra.mrb[0].mxu0 %v468
    %v655 = vpop.f32.mrb[0].mxu0
    %v656 = vadd.f32 %v425, %v655
    %v657 = vpop.f32.mrb[0].mxu0
    %658 = vmatprep.mubr.f32.mxu0 0.0
    %659 = vmatmul.mubr.f32.gmra.mrb[0].mxu0 %v471
    %v660 = vpop.f32.mrb[0].mxu0
    %v661 = vadd.f32 %v425, %v660
    %v662 = vpop.f32.mrb[0].mxu0
    %663 = vmatprep.mubr.f32.mxu0 0.0
    %664 = vmatmul.mubr.f32.gmra.mrb[0].mxu0 %v474
    %v665 = vpop.f32.mrb[0].mxu0
    %v666 = vadd.f32 %v425, %v665
    %v667 = vpop.f32.mrb[0].mxu0
    %668 = vmatprep.mubr.f32.mxu0 0.0
    %669 = vmatmul.mubr.f32.gmra.mrb[0].mxu0 %v477
    %v670 = vpop.f32.mrb[0].mxu0
    %v671 = vadd.f32 %v425, %v670
    %v672 = vpop.f32.mrb[0].mxu0
    %673 = vmatprep.mubr.f32.mxu0 0.0
    %674 = vmatmul.mubr.f32.gmra.mrb[0].mxu0 %v480
    %v675 = vpop.f32.mrb[0].mxu0
    %v676 = vadd.f32 %v425, %v675
    %v677 = vpop.f32.mrb[0].mxu0
    %678 = vmatprep.mubr.f32.mxu0 0.0
    %679 = vmatmul.mubr.f32.gmra.mrb[0].mxu0 %v483
    %v680 = vpop.f32.mrb[0].mxu0
    %v681 = vadd.f32 %v425, %v680
    %v682 = vpop.f32.mrb[0].mxu0
    %683 = vmatprep.mubr.f32.mxu0 0.0
    %684 = vmatmul.mubr.f32.gmra.mrb[0].mxu0 %v486
    %v685 = vpop.f32.mrb[0].mxu0
    %v686 = vadd.f32 %v425, %v685
    %v687 = vpop.f32.mrb[0].mxu0
    %688 = vmatprep.mubr.f32.mxu0 0.0
    %689 = vmatmul.mubr.f32.gmra.mrb[0].mxu0 %v489
    %v690 = vpop.f32.mrb[0].mxu0
    %v691 = vadd.f32 %v425, %v690
    %v692 = vpop.f32.mrb[0].mxu0
    %693 = vmatprep.mubr.f32.mxu0 0.0
    %694 = vmatmul.mubr.f32.gmra.mrb[0].mxu0 %v492
    %v695 = vpop.f32.mrb[0].mxu0
    %v696 = vadd.f32 %v425, %v695
    %v697 = vpop.f32.mrb[0].mxu0
    %698 = vmatprep.mubr.f32.mxu0 0.0
    %699 = vmatmul.mubr.f32.gmra.mrb[0].mxu0 %v495
    %v700 = vpop.f32.mrb[0].mxu0
    %v701 = vadd.f32 %v425, %v700
    %v702 = vpop.f32.mrb[0].mxu0
    %703 = vmatprep.mubr.f32.mxu0 0.0
    %704 = vmatmul.mubr.f32.gmra.mrb[0].mxu0 %v498
    %v705 = vpop.f32.mrb[0].mxu0
    %v706 = vadd.f32 %v425, %v705
    %v707 = vpop.f32.mrb[0].mxu0
    %708 = vmatprep.mubr.f32.mxu0 0.0
    %709 = vmatmul.mubr.f32.gmra.mrb[0].mxu0 %v501
    %v710 = vpop.f32.mrb[0].mxu0
    %v711 = vadd.f32 %v425, %v710
    %v712 = vpop.f32.mrb[0].mxu0
    %713 = vmatprep.mubr.f32.mxu0 0.0
    %714 = vmatmul.mubr.f32.gmra.mrb[0].mxu0 %v504
    %v715 = vpop.f32.mrb[0].mxu0
    %v716 = vadd.f32 %v425, %v715
    %v717 = vpop.f32.mrb[0].mxu0
    %718 = vmatprep.mubr.f32.mxu0 0.0
    %719 = vmatmul.mubr.f32.gmra.mrb[0].mxu0 %v507
    %v720 = vpop.f32.mrb[0].mxu0
    %v721 = vadd.f32 %v425, %v720
    %v722 = vpop.f32.mrb[0].mxu0
    %723 = vmatprep.mubr.f32.mxu0 0.0
    %724 = vmatmul.mubr.f32.gmra.mrb[0].mxu0 %v510
    %v725 = vpop.f32.mrb[0].mxu0
    %v726 = vadd.f32 %v425, %v725
    %v727 = vpop.f32.mrb[0].mxu0
    %728 = vmatprep.mubr.f32.mxu0 0.0
    %729 = vmatmul.mubr.f32.gmra.mrb[0].mxu0 %v513
    %v730 = vpop.f32.mrb[0].mxu0
    %v731 = vadd.f32 %v425, %v730
    %v732 = vpop.f32.mrb[0].mxu0
    %733 = vmatprep.mubr.f32.mxu0 0.0
    %734 = vmatmul.mubr.f32.gmra.mrb[0].mxu0 %v516
    %v735 = vpop.f32.mrb[0].mxu0
    %v736 = vadd.f32 %v425, %v735
    %v737 = vpop.f32.mrb[0].mxu0
    %738 = vmatprep.mubr.f32.mxu0 0.0
    %739 = vmatmul.mubr.f32.gmra.mrb[0].mxu0 %v519
    %v740 = vpop.f32.mrb[0].mxu0
    %v741 = vadd.f32 %v425, %v740
    %v742 = vpop.f32.mrb[0].mxu0
    %743 = vmatprep.mubr.f32.mxu0 0.0
    %744 = vmatmul.mubr.f32.gmra.mrb[0].mxu0 %v522
    %v745 = vpop.f32.mrb[0].mxu0
    %v746 = vadd.f32 %v425, %v745
    %v747 = vpop.f32.mrb[0].mxu0
    %748 = vdwg.mxu0
    %vm749 = vcmask 23552
    %750 = vst.msk [vmem:[#allocation2] sm:$0xff] %vm749, %v591
    %751 = vst.msk [vmem:[#allocation2 + $0x8] sm:$0xff] %vm749, %v596
    %752 = vst.msk [vmem:[#allocation2 + $0x10] sm:$0xff] %vm749, %v601
    %753 = vst.msk [vmem:[#allocation2 + $0x18] sm:$0xff] %vm749, %v606
    %754 = vst.msk [vmem:[#allocation2 + $0x20] sm:$0xff] %vm749, %v611
    %755 = vst.msk [vmem:[#allocation2 + $0x28] sm:$0xff] %vm749, %v616
    %756 = vst.msk [vmem:[#allocation2 + $0x30] sm:$0xff] %vm749, %v621
    %757 = vst.msk [vmem:[#allocation2 + $0x38] sm:$0xff] %vm749, %v626
    %758 = vst.msk [vmem:[#allocation2 + $0x40] sm:$0xff] %vm749, %v631
    %759 = vst.msk [vmem:[#allocation2 + $0x48] sm:$0xff] %vm749, %v636
    %760 = vst.msk [vmem:[#allocation2 + $0x50] sm:$0xff] %vm749, %v641
    %761 = vst.msk [vmem:[#allocation2 + $0x58] sm:$0xff] %vm749, %v646
    %762 = vst.msk [vmem:[#allocation2 + $0x60] sm:$0xff] %vm749, %v651
    %763 = vst.msk [vmem:[#allocation2 + $0x68] sm:$0xff] %vm749, %v656
    %764 = vst.msk [vmem:[#allocation2 + $0x70] sm:$0xff] %vm749, %v661
    %765 = vst.msk [vmem:[#allocation2 + $0x78] sm:$0xff] %vm749, %v666
    %766 = vst.msk [vmem:[#allocation2 + $0x80] sm:$0xff] %vm749, %v671
    %767 = vst.msk [vmem:[#allocation2 + $0x88] sm:$0xff] %vm749, %v676
    %768 = vst.msk [vmem:[#allocation2 + $0x90] sm:$0xff] %vm749, %v681
    %769 = vst.msk [vmem:[#allocation2 + $0x98] sm:$0xff] %vm749, %v686
    %770 = vst.msk [vmem:[#allocation2 + $0xa0] sm:$0xff] %vm749, %v691
    %771 = vst.msk [vmem:[#allocation2 + $0xa8] sm:$0xff] %vm749, %v696
    %772 = vst.msk [vmem:[#allocation2 + $0xb0] sm:$0xff] %vm749, %v701
    %773 = vst.msk [vmem:[#allocation2 + $0xb8] sm:$0xff] %vm749, %v706
    %774 = vst.msk [vmem:[#allocation2 + $0xc0] sm:$0xff] %vm749, %v711
    %775 = vst.msk [vmem:[#allocation2 + $0xc8] sm:$0xff] %vm749, %v716
    %776 = vst.msk [vmem:[#allocation2 + $0xd0] sm:$0xff] %vm749, %v721
    %777 = vst.msk [vmem:[#allocation2 + $0xd8] sm:$0xff] %vm749, %v726
    %778 = vst.msk [vmem:[#allocation2 + $0xe0] sm:$0xff] %vm749, %v731
    %779 = vst.msk [vmem:[#allocation2 + $0xe8] sm:$0xff] %vm749, %v736
    %780 = vst.msk [vmem:[#allocation2 + $0xf0] sm:$0xff] %vm749, %v741
    %781 = vst.msk [vmem:[#allocation2 + $0xf8] sm:$0xff] %vm749, %v746
    // Predicated region
    $region22: #{tpu_custom_call.1} parent=1 // pred_check
      _
    $region23: #{tpu_custom_call.1} parent=1 // pred_check_branch
      %783 = sbr.rel (0) target = $region25
    $region24: #{tpu_custom_call.1} parent=1 // pred_region
      // Predicated region
      $region26: #{tpu_custom_call.1} parent=24 // pred_check
        _
      $region27: #{tpu_custom_call.1} parent=24 // pred_check_branch
        %785 = sbr.rel (0) target = $region29
      $region28: #{tpu_custom_call.1} parent=24 // pred_region
        // Predicated region
        $region30: #{tpu_custom_call.1} parent=28 // pred_check
          _
        $region31: #{tpu_custom_call.1} parent=28 // pred_check_branch
          %787 = sbr.rel (0) target = $region33
        $region32: #{tpu_custom_call.1} parent=28 // pred_region
          // Predicated region
          $region45: #{tpu_custom_call.1} parent=32 // pred_check
            _
          $region46: #{tpu_custom_call.1} parent=32 // pred_check_branch
            %850 = sbr.rel (0) target = $region48
          $region47: #{tpu_custom_call.1} parent=32 // pred_region
            loop: start=0, step=1, limit=1
            $region49: #{tpu_custom_call.1} parent=47 // loop_pre_header
              _
            $region50: #{tpu_custom_call.1} parent=47 // loop_header
              %s852 = sphi 0, %s856
              %p853 = scmp.ge.s32.totalorder %s852, 1
              %s857 = sphi [#allocation2], [#allocation2]
              %s858 = sphi %s5, %s5
            $region51: #{tpu_custom_call.1} parent=47 // loop_header_branch
              %855 = sbr.rel (%p853) target = $region55
            $region52: #{tpu_custom_call.1} parent=47 // loop_body
              %v859 = vld [vmem:[%s857] sm:$0xff]
              %860 = vst [vmem:[%s858] sm:$0xff] %v859
              %v861 = vld [vmem:[%s857 + $0x8] sm:$0xff]
              %862 = vst [vmem:[%s858 + $0x8] sm:$0xff] %v861
              %v863 = vld [vmem:[%s857 + $0x10] sm:$0xff]
              %864 = vst [vmem:[%s858 + $0x10] sm:$0xff] %v863
              %v865 = vld [vmem:[%s857 + $0x18] sm:$0xff]
              %866 = vst [vmem:[%s858 + $0x18] sm:$0xff] %v865
              %v867 = vld [vmem:[%s857 + $0x20] sm:$0xff]
              %868 = vst [vmem:[%s858 + $0x20] sm:$0xff] %v867
              %v869 = vld [vmem:[%s857 + $0x28] sm:$0xff]
              %870 = vst [vmem:[%s858 + $0x28] sm:$0xff] %v869
              %v871 = vld [vmem:[%s857 + $0x30] sm:$0xff]
              %872 = vst [vmem:[%s858 + $0x30] sm:$0xff] %v871
              %v873 = vld [vmem:[%s857 + $0x38] sm:$0xff]
              %874 = vst [vmem:[%s858 + $0x38] sm:$0xff] %v873
              %v875 = vld [vmem:[%s857 + $0x40] sm:$0xff]
              %876 = vst [vmem:[%s858 + $0x40] sm:$0xff] %v875
              %v877 = vld [vmem:[%s857 + $0x48] sm:$0xff]
              %878 = vst [vmem:[%s858 + $0x48] sm:$0xff] %v877
              %v879 = vld [vmem:[%s857 + $0x50] sm:$0xff]
              %880 = vst [vmem:[%s858 + $0x50] sm:$0xff] %v879
              %v881 = vld [vmem:[%s857 + $0x58] sm:$0xff]
              %882 = vst [vmem:[%s858 + $0x58] sm:$0xff] %v881
              %v883 = vld [vmem:[%s857 + $0x60] sm:$0xff]
              %884 = vst [vmem:[%s858 + $0x60] sm:$0xff] %v883
              %v885 = vld [vmem:[%s857 + $0x68] sm:$0xff]
              %886 = vst [vmem:[%s858 + $0x68] sm:$0xff] %v885
              %v887 = vld [vmem:[%s857 + $0x70] sm:$0xff]
              %888 = vst [vmem:[%s858 + $0x70] sm:$0xff] %v887
              %v889 = vld [vmem:[%s857 + $0x78] sm:$0xff]
              %890 = vst [vmem:[%s858 + $0x78] sm:$0xff] %v889
              %v891 = vld [vmem:[%s857 + $0x80] sm:$0xff]
              %892 = vst [vmem:[%s858 + $0x80] sm:$0xff] %v891
              %v893 = vld [vmem:[%s857 + $0x88] sm:$0xff]
              %894 = vst [vmem:[%s858 + $0x88] sm:$0xff] %v893
              %v895 = vld [vmem:[%s857 + $0x90] sm:$0xff]
              %896 = vst [vmem:[%s858 + $0x90] sm:$0xff] %v895
              %v897 = vld [vmem:[%s857 + $0x98] sm:$0xff]
              %898 = vst [vmem:[%s858 + $0x98] sm:$0xff] %v897
              %v899 = vld [vmem:[%s857 + $0xa0] sm:$0xff]
              %900 = vst [vmem:[%s858 + $0xa0] sm:$0xff] %v899
              %v901 = vld [vmem:[%s857 + $0xa8] sm:$0xff]
              %902 = vst [vmem:[%s858 + $0xa8] sm:$0xff] %v901
              %v903 = vld [vmem:[%s857 + $0xb0] sm:$0xff]
              %904 = vst [vmem:[%s858 + $0xb0] sm:$0xff] %v903
              %v905 = vld [vmem:[%s857 + $0xb8] sm:$0xff]
              %906 = vst [vmem:[%s858 + $0xb8] sm:$0xff] %v905
              %v907 = vld [vmem:[%s857 + $0xc0] sm:$0xff]
              %908 = vst [vmem:[%s858 + $0xc0] sm:$0xff] %v907
            $region53: #{tpu_custom_call.1} parent=47 // loop_footer
              %s856 = sadd.s32 1, %s852
            $region54: #{tpu_custom_call.1} parent=47 // loop_footer_branch
              %851 = sbr.rel target = $region50
            $region55: #{tpu_custom_call.1} parent=47 // loop_exit
              _
          $region48: #{tpu_custom_call.1} parent=32 // pred_fallthru
            _
          // Predicated region
          $region56: #{tpu_custom_call.1} parent=32 // pred_check
            _
          $region57: #{tpu_custom_call.1} parent=32 // pred_check_branch
            %910 = sbr.rel target = $region59
          $region58: #{tpu_custom_call.1} parent=32 // pred_region
            _
          $region59: #{tpu_custom_call.1} parent=32 // pred_fallthru
            _
        $region33: #{tpu_custom_call.1} parent=28 // pred_fallthru
          _
        // Predicated region
        $region34: #{tpu_custom_call.1} parent=28 // pred_check
          _
        $region35: #{tpu_custom_call.1} parent=28 // pred_check_branch
          %789 = sbr.rel target = $region37
        $region36: #{tpu_custom_call.1} parent=28 // pred_region
          loop: start=0, step=1, limit=1
          $region38: #{tpu_custom_call.1} parent=36 // loop_pre_header
            _
          $region39: #{tpu_custom_call.1} parent=36 // loop_header
            %s792 = sphi 0, %s796
            %p793 = scmp.ge.s32.totalorder %s792, 1
            %s797 = sphi [#allocation2], [#allocation2]
            %s798 = sphi %s5, %s5
          $region40: #{tpu_custom_call.1} parent=36 // loop_header_branch
            %795 = sbr.rel (%p793) target = $region44
          $region41: #{tpu_custom_call.1} parent=36 // loop_body
            %v799 = vld [vmem:[%s797] sm:$0xff]
            %800 = vst [vmem:[%s798] sm:$0xff] %v799
            %v801 = vld [vmem:[%s797 + $0x8] sm:$0xff]
            %802 = vst [vmem:[%s798 + $0x8] sm:$0xff] %v801
            %v803 = vld [vmem:[%s797 + $0x10] sm:$0xff]
            %804 = vst [vmem:[%s798 + $0x10] sm:$0xff] %v803
            %v805 = vld [vmem:[%s797 + $0x18] sm:$0xff]
            %806 = vst [vmem:[%s798 + $0x18] sm:$0xff] %v805
            %v807 = vld [vmem:[%s797 + $0x20] sm:$0xff]
            %808 = vst [vmem:[%s798 + $0x20] sm:$0xff] %v807
            %v809 = vld [vmem:[%s797 + $0x28] sm:$0xff]
            %810 = vst [vmem:[%s798 + $0x28] sm:$0xff] %v809
            %v811 = vld [vmem:[%s797 + $0x30] sm:$0xff]
            %812 = vst [vmem:[%s798 + $0x30] sm:$0xff] %v811
            %v813 = vld [vmem:[%s797 + $0x38] sm:$0xff]
            %814 = vst [vmem:[%s798 + $0x38] sm:$0xff] %v813
            %v815 = vld [vmem:[%s797 + $0x40] sm:$0xff]
            %816 = vst [vmem:[%s798 + $0x40] sm:$0xff] %v815
            %v817 = vld [vmem:[%s797 + $0x48] sm:$0xff]
            %818 = vst [vmem:[%s798 + $0x48] sm:$0xff] %v817
            %v819 = vld [vmem:[%s797 + $0x50] sm:$0xff]
            %820 = vst [vmem:[%s798 + $0x50] sm:$0xff] %v819
            %v821 = vld [vmem:[%s797 + $0x58] sm:$0xff]
            %822 = vst [vmem:[%s798 + $0x58] sm:$0xff] %v821
            %v823 = vld [vmem:[%s797 + $0x60] sm:$0xff]
            %824 = vst [vmem:[%s798 + $0x60] sm:$0xff] %v823
            %v825 = vld [vmem:[%s797 + $0x68] sm:$0xff]
            %826 = vst [vmem:[%s798 + $0x68] sm:$0xff] %v825
            %v827 = vld [vmem:[%s797 + $0x70] sm:$0xff]
            %828 = vst [vmem:[%s798 + $0x70] sm:$0xff] %v827
            %v829 = vld [vmem:[%s797 + $0x78] sm:$0xff]
            %830 = vst [vmem:[%s798 + $0x78] sm:$0xff] %v829
            %v831 = vld [vmem:[%s797 + $0x80] sm:$0xff]
            %832 = vst [vmem:[%s798 + $0x80] sm:$0xff] %v831
            %v833 = vld [vmem:[%s797 + $0x88] sm:$0xff]
            %834 = vst [vmem:[%s798 + $0x88] sm:$0xff] %v833
            %v835 = vld [vmem:[%s797 + $0x90] sm:$0xff]
            %836 = vst [vmem:[%s798 + $0x90] sm:$0xff] %v835
            %v837 = vld [vmem:[%s797 + $0x98] sm:$0xff]
            %838 = vst [vmem:[%s798 + $0x98] sm:$0xff] %v837
            %v839 = vld [vmem:[%s797 + $0xa0] sm:$0xff]
            %840 = vst [vmem:[%s798 + $0xa0] sm:$0xff] %v839
            %v841 = vld [vmem:[%s797 + $0xa8] sm:$0xff]
            %842 = vst [vmem:[%s798 + $0xa8] sm:$0xff] %v841
            %v843 = vld [vmem:[%s797 + $0xb0] sm:$0xff]
            %844 = vst [vmem:[%s798 + $0xb0] sm:$0xff] %v843
            %v845 = vld [vmem:[%s797 + $0xb8] sm:$0xff]
            %846 = vst [vmem:[%s798 + $0xb8] sm:$0xff] %v845
            %v847 = vld [vmem:[%s797 + $0xc0] sm:$0xff]
            %848 = vst [vmem:[%s798 + $0xc0] sm:$0xff] %v847
          $region42: #{tpu_custom_call.1} parent=36 // loop_footer
            %s796 = sadd.s32 1, %s792
          $region43: #{tpu_custom_call.1} parent=36 // loop_footer_branch
            %791 = sbr.rel target = $region39
          $region44: #{tpu_custom_call.1} parent=36 // loop_exit
            _
        $region37: #{tpu_custom_call.1} parent=28 // pred_fallthru
          _
      $region29: #{tpu_custom_call.1} parent=24 // pred_fallthru
        _
      %911 = vnop
    $region25: #{tpu_custom_call.1} parent=1 // pred_fallthru
      _
    // Predicated region
    $region60: #{tpu_custom_call.1} parent=1 // pred_check
      _
    $region61: #{tpu_custom_call.1} parent=1 // pred_check_branch
      %913 = sbr.rel (0) target = $region63
    $region62: #{tpu_custom_call.1} parent=1 // pred_region
      _
    $region63: #{tpu_custom_call.1} parent=1 // pred_fallthru
      _

</llo_original>
